<compile_context>
chip_gen: v5e
topology: v5e:2x2
jax: 0.10.0
libtpu: 0.0.40
codegen_flags: <defaults>
</compile_context>

<pallas_src>
import functools

import jax
import jax.numpy as jnp
from jax.experimental import pallas as pl
from jax.experimental.pallas import tpu as pltpu


def _round_up(x, m):
    return ((x + m - 1) // m) * m


# ---------------------------------------------------------------------------
# Kernel
# ---------------------------------------------------------------------------
def qnetwork_kernel(state_ref, action_ref, slab_ref, q_ref, *, ni, na, hidden):
    """Fused twin-Q MLP: 3 matmuls over packed weights, (TB, 2) output."""
    D = ni + na
    H2 = 2 * hidden

    # Single load of the whole parameter slab (one DMA upstream).
    w = slab_ref[...]                       # (R_pad, 2H) f32

    s = state_ref[...]                      # (TB, ni)
    a = action_ref[...]                     # (TB, na)

    # Slab row layout (all static offsets):
    #   [0, D)          : W1p  = [W1 | W4]              (D, 2H)
    #   [D, D+2H)       : W2p  = blockdiag(W2, W5)      (2H, 2H)
    #   [D+2H, D+4H)    : W3p  = [W3 | W6] (cols 0,1)   (2H, 2H-padded)
    #   D+4H            : b1p  = [b1 | b4]              (1, 2H)
    #   D+4H+1          : b2p  = [b2 | b5]              (1, 2H)
    #   D+4H+2          : b3p  = [b3 | b6] (cols 0,1)   (1, 2H-padded)
    b_off = D + 2 * H2

    # Layer 1: concat(state, action) @ W1p realized as a split-row matmul sum.
    h = (jnp.dot(s, w[0:ni, :], preferred_element_type=jnp.float32)
         + jnp.dot(a, w[ni:D, :], preferred_element_type=jnp.float32)
         + w[b_off:b_off + 1, :])
    h = jnp.maximum(h, 0.0)

    # Layer 2: block-diagonal weight keeps the two Q branches independent.
    h = (jnp.dot(h, w[D:D + H2, :], preferred_element_type=jnp.float32)
         + w[b_off + 1:b_off + 2, :])
    h = jnp.maximum(h, 0.0)

    # Layer 3: lane-packed (TB, 2) result; column 0 = q1, column 1 = q2.
    q = (jnp.dot(h, w[D + H2:D + 2 * H2, 0:2],
                 preferred_element_type=jnp.float32)
         + w[b_off + 2:b_off + 3, 0:2])
    q_ref[...] = q.astype(q_ref.dtype)


# ---------------------------------------------------------------------------
# Wrapper
# ---------------------------------------------------------------------------
def qnetwork_forward(state, action, slab, hidden_dim, *, max_row_tile=256):
    """Pallas twin-Q forward. Returns (q1, q2) each of shape (B, 1)."""
    B, ni = state.shape
    na = action.shape[1]
    R, C = slab.shape

    # Row tile: multiple of 8 sublanes; large tiles amortize per-step overhead
    # when the caller batches many transitions per call.
    tb = min(max_row_tile, _round_up(B, 8))
    b_pad = _round_up(B, tb)
    if b_pad != B:
        state = jnp.pad(state, ((0, b_pad - B), (0, 0)))
        action = jnp.pad(action, ((0, b_pad - B), (0, 0)))

    kernel = functools.partial(qnetwork_kernel, ni=ni, na=na, hidden=hidden_dim)

    q = pl.pallas_call(
        kernel,
        out_shape=jax.ShapeDtypeStruct((b_pad, 2), jnp.float32),
        grid_spec=pltpu.PrefetchScalarGridSpec(
            num_scalar_prefetch=0,
            grid=(b_pad // tb,),
            in_specs=[
                pl.BlockSpec((tb, ni), lambda i: (i, 0)),   # state rows
                pl.BlockSpec((tb, na), lambda i: (i, 0)),   # action rows
                pl.BlockSpec((R, C), lambda i: (0, 0)),     # full param slab
            ],
            out_specs=pl.BlockSpec((tb, 2), lambda i: (i, 0)),
        ),
        compiler_params=pltpu.CompilerParams(
            dimension_semantics=("parallel",),
            vmem_limit_bytes=32 * 1024 * 1024,
        ),
    )(state, action, slab)

    q = q[:B]
    return q[:, 0:1], q[:, 1:2]


# ---------------------------------------------------------------------------
# Parameter init / packing
# ---------------------------------------------------------------------------
def xavier_uniform(key, fan_in, fan_out, gain=1.0):
    # matches torch.nn.init.xavier_uniform_ (gain=1)
    limit = gain * jnp.sqrt(6.0 / (fan_in + fan_out))
    return jax.random.uniform(key, (fan_in, fan_out), jnp.float32, -limit, limit)


def init_qnetwork_params(key, num_inputs, num_actions, hidden_dim):
    D = num_inputs + num_actions
    shapes = [(D, hidden_dim), (hidden_dim, hidden_dim), (hidden_dim, 1),
              (D, hidden_dim), (hidden_dim, hidden_dim), (hidden_dim, 1)]
    keys = jax.random.split(key, len(shapes))
    params = {}
    for i, ((fi, fo), k) in enumerate(zip(shapes, keys), start=1):
        params[f"w{i}"] = xavier_uniform(k, fi, fo)
        params[f"b{i}"] = jnp.zeros((1, fo), jnp.float32)   # constant_(bias, 0)
    return params


def pack_qnetwork_params(params, num_inputs, num_actions, hidden_dim):
    """Pack the 12 per-layer tensors into one (R_pad, 2H) slab (single DMA)."""
    H = hidden_dim
    D = num_inputs + num_actions
    H2 = 2 * H

    w1p = jnp.concatenate([params["w1"], params["w4"]], axis=1)          # (D, 2H)
    w2p = jnp.zeros((H2, H2), jnp.float32)
    w2p = w2p.at[:H, :H].set(params["w2"]).at[H:, H:].set(params["w5"])  # blockdiag
    w3p = jnp.zeros((H2, H2), jnp.float32)
    w3p = w3p.at[:H, 0:1].set(params["w3"]).at[H:, 1:2].set(params["w6"])
    b1p = jnp.concatenate([params["b1"], params["b4"]], axis=1)          # (1, 2H)
    b2p = jnp.concatenate([params["b2"], params["b5"]], axis=1)          # (1, 2H)
    b3p = jnp.zeros((1, H2), jnp.float32)
    b3p = b3p.at[:, 0:1].set(params["b3"]).at[:, 1:2].set(params["b6"])

    slab = jnp.concatenate([w1p, w2p, w3p, b1p, b2p, b3p], axis=0)       # (D+4H+3, 2H)
    rows = slab.shape[0]
    rows_pad = _round_up(rows, 8)
    slab = jnp.pad(slab, ((0, rows_pad - rows), (0, 0)))
    return slab


# ---------------------------------------------------------------------------
# Plain-JAX reference (unfused) for verification
# ---------------------------------------------------------------------------
def qnetwork_reference(state, action, params):
    xu = jnp.concatenate([state, action], axis=1)
    h1 = jax.nn.relu(xu @ params["w1"] + params["b1"])
    h1 = jax.nn.relu(h1 @ params["w2"] + params["b2"])
    q1 = h1 @ params["w3"] + params["b3"]
    h2 = jax.nn.relu(xu @ params["w4"] + params["b4"])
    h2 = jax.nn.relu(h2 @ params["w5"] + params["b5"])
    q2 = h2 @ params["w6"] + params["b6"]
    return q1, q2


if __name__ == "__main__":
    num_inputs, num_actions, hidden_dim = 12, 4, 32
    batch = 8

    key = jax.random.PRNGKey(0)
    k_state, k_action, k_params = jax.random.split(key, 3)

    state = jax.random.normal(k_state, (batch, num_inputs), jnp.float32)
    action = jax.random.uniform(k_action, (batch, num_actions), jnp.float32,
                                minval=-1.0, maxval=1.0)

    raw_params = init_qnetwork_params(k_params, num_inputs, num_actions, hidden_dim)
    slab = pack_qnetwork_params(raw_params, num_inputs, num_actions, hidden_dim)

    q1, q2 = qnetwork_forward(state, action, slab, hidden_dim)
    jax.block_until_ready((q1, q2))

    r1, r2 = qnetwork_reference(state, action, raw_params)
    assert q1.shape == (batch, 1) and q2.shape == (batch, 1)
    assert jnp.allclose(q1, r1, atol=1e-5), "q1 mismatch vs reference"
    assert jnp.allclose(q2, r2, atol=1e-5), "q2 mismatch vs reference"

    print("KERNEL_OK")
</pallas_src>

<mosaic_0001>
module attributes {stable_mosaic.version = 11 : i64} {
  func.func @qnetwork_kernel(%arg0: i32, %arg1: memref<8x12xf32, #tpu.memory_space<vmem>>, %arg2: memref<8x4xf32, #tpu.memory_space<vmem>>, %arg3: memref<152x64xf32, #tpu.memory_space<vmem>>, %arg4: memref<8x2xf32, #tpu.memory_space<vmem>>) attributes {dimension_semantics = [#tpu.dimension_semantics<parallel>], iteration_bounds = array<i64: 1>, scalar_prefetch = 0 : i64, scratch_operands = 0 : i64, tpu.core_type = #tpu.core_type<tc>, window_params = [{transform_indices = @transform_0, window_bounds = array<i64: 8, 12>}, {transform_indices = @transform_1, window_bounds = array<i64: 8, 4>}, {pipeline_mode = #tpu.pipeline_mode<synchronous>, transform_indices = @transform_2, window_bounds = array<i64: 152, 64>}, {transform_indices = @transform_3, window_bounds = array<i64: 8, 2>}]} {
    %c0 = arith.constant 0 : index
    %c0_0 = arith.constant 0 : index
    %0 = vector.load %arg3[%c0, %c0_0] : memref<152x64xf32, #tpu.memory_space<vmem>>, vector<152x64xf32>
    %c0_1 = arith.constant 0 : index
    %c0_2 = arith.constant 0 : index
    %1 = vector.load %arg1[%c0_1, %c0_2] : memref<8x12xf32, #tpu.memory_space<vmem>>, vector<8x12xf32>
    %c0_3 = arith.constant 0 : index
    %c0_4 = arith.constant 0 : index
    %2 = vector.load %arg2[%c0_3, %c0_4] : memref<8x4xf32, #tpu.memory_space<vmem>>, vector<8x4xf32>
    %3 = vector.extract_strided_slice %0 {offsets = [0, 0], sizes = [12, 64], strides = [1, 1]} : vector<152x64xf32> to vector<12x64xf32>
    %cst = arith.constant dense<0.000000e+00> : vector<8x64xf32>
    %4 = tpu.matmul %1, %3, %cst {dimension_numbers = #tpu.dot_dimension_numbers<[1], [0], [0], [1], [0, 0, 1, 1], [], []>} : vector<8x12xf32>, vector<12x64xf32>, vector<8x64xf32> -> vector<8x64xf32>
    %5 = vector.extract_strided_slice %0 {offsets = [12, 0], sizes = [4, 64], strides = [1, 1]} : vector<152x64xf32> to vector<4x64xf32>
    %cst_5 = arith.constant dense<0.000000e+00> : vector<8x64xf32>
    %6 = tpu.matmul %2, %5, %cst_5 {dimension_numbers = #tpu.dot_dimension_numbers<[1], [0], [0], [1], [0, 0, 1, 1], [], []>} : vector<8x4xf32>, vector<4x64xf32>, vector<8x64xf32> -> vector<8x64xf32>
    %7 = arith.addf %4, %6 : vector<8x64xf32>
    %8 = vector.extract_strided_slice %0 {offsets = [144, 0], sizes = [1, 64], strides = [1, 1]} : vector<152x64xf32> to vector<1x64xf32>
    %9 = vector.broadcast %8 : vector<1x64xf32> to vector<8x64xf32>
    %10 = arith.addf %7, %9 : vector<8x64xf32>
    %cst_6 = arith.constant 0.000000e+00 : f32
    %11 = vector.broadcast %cst_6 : f32 to vector<8x64xf32>
    %12 = arith.maximumf %10, %11 : vector<8x64xf32>
    %13 = vector.extract_strided_slice %0 {offsets = [16, 0], sizes = [64, 64], strides = [1, 1]} : vector<152x64xf32> to vector<64x64xf32>
    %cst_7 = arith.constant dense<0.000000e+00> : vector<8x64xf32>
    %14 = tpu.matmul %12, %13, %cst_7 {dimension_numbers = #tpu.dot_dimension_numbers<[1], [0], [0], [1], [0, 0, 1, 1], [], []>} : vector<8x64xf32>, vector<64x64xf32>, vector<8x64xf32> -> vector<8x64xf32>
    %15 = vector.extract_strided_slice %0 {offsets = [145, 0], sizes = [1, 64], strides = [1, 1]} : vector<152x64xf32> to vector<1x64xf32>
    %16 = vector.broadcast %15 : vector<1x64xf32> to vector<8x64xf32>
    %17 = arith.addf %14, %16 : vector<8x64xf32>
    %cst_8 = arith.constant 0.000000e+00 : f32
    %18 = vector.broadcast %cst_8 : f32 to vector<8x64xf32>
    %19 = arith.maximumf %17, %18 : vector<8x64xf32>
    %20 = vector.extract_strided_slice %0 {offsets = [80, 0], sizes = [64, 2], strides = [1, 1]} : vector<152x64xf32> to vector<64x2xf32>
    %cst_9 = arith.constant dense<0.000000e+00> : vector<8x2xf32>
    %21 = tpu.matmul %19, %20, %cst_9 {dimension_numbers = #tpu.dot_dimension_numbers<[1], [0], [0], [1], [0, 0, 1, 1], [], []>} : vector<8x64xf32>, vector<64x2xf32>, vector<8x2xf32> -> vector<8x2xf32>
    %22 = vector.extract_strided_slice %0 {offsets = [146, 0], sizes = [1, 2], strides = [1, 1]} : vector<152x64xf32> to vector<1x2xf32>
    %23 = vector.broadcast %22 : vector<1x2xf32> to vector<8x2xf32>
    %24 = arith.addf %21, %23 : vector<8x2xf32>
    %c0_10 = arith.constant 0 : index
    %c0_11 = arith.constant 0 : index
    %25 = vector.load %arg4[%c0_10, %c0_11] : memref<8x2xf32, #tpu.memory_space<vmem>>, vector<8x2xf32>
    tpu.vector_store %arg4[%c0_10, %c0_11], %24 {strides = array<i32>} : memref<8x2xf32, #tpu.memory_space<vmem>>, vector<8x2xf32>,
    return
  }
  func.func @transform_0(%arg0: i32) -> (i32, i32) {
    %c0_i32 = arith.constant 0 : i32
    %c0_i32_0 = arith.constant 0 : i32
    return %arg0, %c0_i32 : i32, i32
  }
  func.func @transform_1(%arg0: i32) -> (i32, i32) {
    %c0_i32 = arith.constant 0 : i32
    %c0_i32_0 = arith.constant 0 : i32
    return %arg0, %c0_i32 : i32, i32
  }
  func.func @transform_2(%arg0: i32) -> (i32, i32) {
    %c0_i32 = arith.constant 0 : i32
    %c0_i32_0 = arith.constant 0 : i32
    %c0_i32_1 = arith.constant 0 : i32
    return %c0_i32, %c0_i32_0 : i32, i32
  }
  func.func @transform_3(%arg0: i32) -> (i32, i32) {
    %c0_i32 = arith.constant 0 : i32
    %c0_i32_0 = arith.constant 0 : i32
    return %arg0, %c0_i32 : i32, i32
  }
}

</mosaic_0001>

<llo_original>
// kernel: tpu_custom_call.1
$region0: #{tpu_custom_call.1}
  #allocation0 [shape = 'u32[]', space=smem, size = 0x4, offset = 0x4, fixed_abs, tag = 'smem constant byte address 0x4 - core index']
  #allocation1 [shape = 'u32[72,128]{1,0:T(1,128)}', space=vmem, size = 0x9000, scoped, tag = 'internal scratch']
  %s0 = inlined_call_operand.vmem [shape: f32[8,12], index: 0, kind: input, shape index: {}]
  %s1 = inlined_call_operand.vmem [shape: f32[8,4], index: 1, kind: input, shape index: {}]
  %s2 = inlined_call_operand.vmem [shape: f32[152,64], index: 2, kind: input, shape index: {}]
  %s3 = inlined_call_operand.vmem [shape: f32[8,2], index: 3, kind: output, shape index: {}]
  %s4 = sld [smem:[#allocation0]]
  $region22: #{tpu_custom_call.1} parent=0
    _
  %s6 = ssub.s32 1, %s4
  %s7 = scalar_select 0, %s6, %s4
  // Predicated region
  $region2: #{tpu_custom_call.1} parent=0 // pred_check
    _
  $region3: #{tpu_custom_call.1} parent=0 // pred_check_branch
    %9 = sbr.rel (0) target = $region5
  $region4: #{tpu_custom_call.1} parent=0 // pred_region
    _
  $region5: #{tpu_custom_call.1} parent=0 // pred_fallthru
    _
  // Predicated region
  $region6: #{tpu_custom_call.1} parent=0 // pred_check
    _
  $region7: #{tpu_custom_call.1} parent=0 // pred_check_branch
    %11 = sbr.rel (0) target = $region9
  $region8: #{tpu_custom_call.1} parent=0 // pred_region
    _
  $region9: #{tpu_custom_call.1} parent=0 // pred_fallthru
    _
  // Predicated region
  $region10: #{tpu_custom_call.1} parent=0 // pred_check
    _
  $region11: #{tpu_custom_call.1} parent=0 // pred_check_branch
    %13 = sbr.rel (0) target = $region13
  $region12: #{tpu_custom_call.1} parent=0 // pred_region
    _
  $region13: #{tpu_custom_call.1} parent=0 // pred_fallthru
    _
  %v14 = vld [vmem:[%s2] sm:$0xff]
  %v15 = vld [vmem:[%s2 + $0x8] sm:$0xff]
  %v16 = vld [vmem:[%s2 + $0x10] sm:$0xff]
  %v17 = vld [vmem:[%s2 + $0x18] sm:$0xff]
  %v18 = vld [vmem:[%s2 + $0x20] sm:$0xff]
  %v19 = vld [vmem:[%s2 + $0x28] sm:$0xff]
  %v20 = vld [vmem:[%s2 + $0x30] sm:$0xff]
  %v21 = vld [vmem:[%s2 + $0x38] sm:$0xff]
  %v22 = vld [vmem:[%s2 + $0x40] sm:$0xff]
  %v23 = vld [vmem:[%s2 + $0x48] sm:$0xff]
  %v24 = vld [vmem:[%s2 + $0x50] sm:$0xff]
  %v25 = vld [vmem:[%s2 + $0x58] sm:$0xff]
  %v26 = vld [vmem:[%s2 + $0x60] sm:$0xff]
  %v27 = vld [vmem:[%s2 + $0x68] sm:$0xff]
  %v28 = vld [vmem:[%s2 + $0x70] sm:$0xff]
  %v29 = vld [vmem:[%s2 + $0x78] sm:$0xff]
  %v30 = vld [vmem:[%s2 + $0x80] sm:$0xff]
  %v31 = vld [vmem:[%s2 + $0x88] sm:$0xff]
  %v32 = vld [vmem:[%s2 + $0x90] sm:$0xff]
  %v33 = vld [vmem:[%s0] sm:$0xff]
  %v34 = vld [vmem:[%s1] sm:$0xff]
  %v36 = vrot.slane %v15, 4
  %vm37 = vcmask 31744
  %v39 = vsel %vm37, %v34, 0
  %vm41 = vcmask 1043456
  %v42 = vsel %vm41, %v36, 0
  %44 = vmatpush.msra.mxu0 0.0
  %45 = vmatpush.msra.mxu0 0.0
  %46 = vmatpush.msra.mxu0 0.0
  %47 = vmatpush.msra.mxu0 0.0
  %48 = vmatpush.msra.mxu0 0.0
  %49 = vmatpush.msra.mxu0 0.0
  %50 = vmatpush.msra.mxu0 0.0
  %51 = vmatpush.msra.mxu0 0.0
  %52 = vmatpush.msra.mxu0 0.0
  %53 = vmatpush.msra.mxu0 0.0
  %54 = vmatpush.msra.mxu0 0.0
  %55 = vmatpush.msra.mxu0 0.0
  %56 = vmatpush.msra.mxu0 0.0
  %57 = vmatpush.msra.mxu0 0.0
  %58 = vmatpush.msra.mxu0 0.0
  %59 = vmatpush.msra.mxu0 %v42
  %60 = vmatmul.f32.gmra.mxu0 %v39
  %v61 = vpop.f32.mrf.mxu0
  %v62 = vadd.f32 0.0, %v61
  %63 = vdwg.mxu0
  %vm64 = vcmask 97280
  %v66 = vsel %vm64, %v33, 0
  %v68 = vsel %vm41, %v15, 0
  %70 = vmatpush.msra.mxu0 0.0
  %71 = vmatpush.msra.mxu0 0.0
  %72 = vmatpush.msra.mxu0 0.0
  %73 = vmatpush.msra.mxu0 0.0
  %74 = vmatpush.msra.mxu0 0.0
  %75 = vmatpush.msra.mxu0 0.0
  %76 = vmatpush.msra.mxu0 0.0
  %77 = vmatpush.msra.mxu0 0.0
  %78 = vmatpush.msra.mxu0 0.0
  %79 = vmatpush.msra.mxu0 0.0
  %80 = vmatpush.msra.mxu0 0.0
  %81 = vmatpush.msra.mxu0 0.0
  %82 = vmatpush.msra.mxu0 0.0
  %83 = vmatpush.msra.mxu0 0.0
  %84 = vmatpush.msra.mxu0 %v68
  %85 = vmatpush.msra.mxu0 %v14
  %86 = vmatmul.f32.gmra.mxu0 %v66
  %v87 = vpop.f32.mrf.mxu0
  %v88 = vadd.f32 %v62, %v87
  %89 = vdwg.mxu0
  %v90 = vperm.slane %v32, 0
  %v91 = vadd.f32 %v88, %v90
  %v92 = vmax.f32 %v91, 0.0
  %v93 = vperm.slane %v32, 1
  %vm94 = vcmask 523264
  %v96 = vsel %vm94, %v92, 0
  %98 = vmatpush.msra.mxu0 0.0
  %99 = vmatpush.msra.mxu0 0.0
  %100 = vmatpush.msra.mxu0 0.0
  %101 = vmatpush.msra.mxu0 0.0
  %102 = vmatpush.msra.mxu0 0.0
  %103 = vmatpush.msra.mxu0 0.0
  %104 = vmatpush.msra.mxu0 0.0
  %105 = vmatpush.msra.mxu0 0.0
  %106 = vmatpush.msra.mxu0 %v23
  %107 = vmatpush.msra.mxu0 %v22
  %108 = vmatpush.msra.mxu0 %v21
  %109 = vmatpush.msra.mxu0 %v20
  %110 = vmatpush.msra.mxu0 %v19
  %111 = vmatpush.msra.mxu0 %v18
  %112 = vmatpush.msra.mxu0 %v17
  %113 = vmatpush.msra.mxu0 %v16
  %114 = vmatmul.f32.gmra.mxu0 %v96
  %v115 = vpop.f32.mrf.mxu0
  %v116 = vadd.f32 %v93, %v115
  %117 = vdwg.mxu0
  %v118 = vmax.f32 %v116, 0.0
  %v119 = vperm.slane %v32, 2
  %v121 = vsel %vm94, %v118, 0
  %123 = vmatpush.msra.mxu0 0.0
  %124 = vmatpush.msra.mxu0 0.0
  %125 = vmatpush.msra.mxu0 0.0
  %126 = vmatpush.msra.mxu0 0.0
  %127 = vmatpush.msra.mxu0 0.0
  %128 = vmatpush.msra.mxu0 0.0
  %129 = vmatpush.msra.mxu0 0.0
  %130 = vmatpush.msra.mxu0 0.0
  %131 = vmatpush.msra.mxu0 %v31
  %132 = vmatpush.msra.mxu0 %v30
  %133 = vmatpush.msra.mxu0 %v29
  %134 = vmatpush.msra.mxu0 %v28
  %135 = vmatpush.msra.mxu0 %v27
  %136 = vmatpush.msra.mxu0 %v26
  %137 = vmatpush.msra.mxu0 %v25
  %138 = vmatpush.msra.mxu0 %v24
  %139 = vmatmul.f32.gmra.mxu0 %v121
  %v140 = vpop.f32.mrf.mxu0
  %v141 = vadd.f32 %v119, %v140
  %142 = vdwg.mxu0
  %vm143 = vcmask 15360
  %144 = vst.msk [vmem:[%s3] sm:$0xff] %vm143, %v141
  // Predicated region
  $region14: #{tpu_custom_call.1} parent=0 // pred_check
    _
  $region15: #{tpu_custom_call.1} parent=0 // pred_check_branch
    %146 = sbr.rel (0) target = $region17
  $region16: #{tpu_custom_call.1} parent=0 // pred_region
    _
  $region17: #{tpu_custom_call.1} parent=0 // pred_fallthru
    _
  // Predicated region
  $region18: #{tpu_custom_call.1} parent=0 // pred_check
    _
  $region19: #{tpu_custom_call.1} parent=0 // pred_check_branch
    %148 = sbr.rel (0) target = $region21
  $region20: #{tpu_custom_call.1} parent=0 // pred_region
    _
  $region21: #{tpu_custom_call.1} parent=0 // pred_fallthru
    _

</llo_original>
